<compile_context>
chip_gen: v6e
topology: v6e:2x2x1
jax: 0.10.0
libtpu: 0.0.40
codegen_flags: <defaults>
</compile_context>

<pallas_src>
import jax
import jax.numpy as jnp
import numpy as np
from jax.experimental import pallas as pl
from jax.experimental.pallas import tpu as pltpu

LEAKY_SLOPE = 0.01   # PyTorch nn.LeakyReLU default negative_slope
BN_EPS = 1e-5        # PyTorch BatchNorm1d default eps
LANE = 128


def _round_up(n, m):
    return (n + m - 1) // m * m


def _num_tensorcores():
    """Best-effort TensorCores-per-chip detection (2 on v7x, 1 on v5e/v6e)."""
    try:
        kind = jax.devices()[0].device_kind.lower()
        if "v7" in kind:
            return 2
    except Exception:
        pass
    return 1


def _pick_batch_tile(batch, num_tc, tm_cap=512):
    """Fewest useful grid steps: one step per TC for small batches, <=tm_cap rows per step
    for large ones. Tile is a multiple of 16 sublanes (bf16 min tile is (16, 128))."""
    steps = max(1, -(-batch // tm_cap))      # enough steps to keep tm <= tm_cap
    steps = _round_up(steps, num_tc)         # keep every TensorCore fed
    return _round_up(-(-batch // steps), 16)


def _ann_kernel(x_ref, w1_ref, w2_ref, c2_ref, w3_ref, b3_ref, o_ref):
    """Fused 3-layer MLP forward for one batch tile (eval semantics).

    x carries an appended 1.0 column, so fc1's bias + folded BN1 shift ride the MXU:
      h1  = leaky_relu([x | 1] @ [W1*s1 ; c1])       # Linear + folded BN1 (+ Dropout = id)
      h2  = leaky_relu(h1 @ (W2*s2) + c2)            # Linear + folded BN2 (+ Dropout = id)
      out = h2 @ W3 + b3                             # final Linear
    Matmul inputs bf16, accumulation/epilogue f32, output stored bf16.
    """
    h1 = jnp.dot(x_ref[...], w1_ref[...], preferred_element_type=jnp.float32)
    h1 = jnp.maximum(h1, LEAKY_SLOPE * h1)           # LeakyReLU (valid since 0 < slope < 1)

    h2 = jnp.dot(h1.astype(w2_ref.dtype), w2_ref[...],
                 preferred_element_type=jnp.float32) + c2_ref[...]
    h2 = jnp.maximum(h2, LEAKY_SLOPE * h2)

    out = jnp.dot(h2.astype(w3_ref.dtype), w3_ref[...],
                  preferred_element_type=jnp.float32) + b3_ref[...]
    o_ref[...] = out.astype(o_ref.dtype)


def ann_classifier_forward(x, kparams, output_dim, *, tm=None):
    """x: (B, input_dim) f32. kparams: folded/padded bf16 weights + f32 shifts.
    Returns (B, output_dim) f32."""
    w1, w2, c2, w3, b3 = kparams
    B, din = x.shape
    din_p, h1_p = w1.shape
    h2_p = w2.shape[1]
    dout_p = w3.shape[1]

    if tm is None:
        tm = _pick_batch_tile(B, _num_tensorcores())

    # Feature-dim pad + bias column + bf16 cast only; the batch dim is NOT padded.
    # The last grid step may read rows past B -> they only land in discarded output rows.
    xp = jnp.concatenate([x, jnp.ones((B, 1), x.dtype)], axis=1)
    xp = jnp.pad(xp, ((0, 0), (0, din_p - din - 1))).astype(jnp.bfloat16)

    grid = (pl.cdiv(B, tm),)
    resident = lambda i: (0, 0)   # weights/shifts stay VMEM-resident across all grid steps

    out_p = pl.pallas_call(
        _ann_kernel,
        out_shape=jax.ShapeDtypeStruct((B, dout_p), jnp.bfloat16),
        grid=grid,
        in_specs=[
            pl.BlockSpec((tm, din_p), lambda i: (i, 0)),   # streamed x tile
            pl.BlockSpec((din_p, h1_p), resident),         # [W1*s1 ; c1]
            pl.BlockSpec((h1_p, h2_p), resident),          # W2*s2
            pl.BlockSpec((1, h2_p), resident),             # c2
            pl.BlockSpec((h2_p, dout_p), resident),        # W3
            pl.BlockSpec((1, dout_p), resident),           # b3
        ],
        out_specs=pl.BlockSpec((tm, dout_p), lambda i: (i, 0)),
        compiler_params=pltpu.CompilerParams(
            dimension_semantics=("parallel",)),            # shards batch tiles across v7x TCs
    )(xp, w1, w2, c2, w3, b3)

    return out_p[:B, :output_dim].astype(jnp.float32)


def init_raw_params(key, input_dim, hidden_dim=256, output_dim=3):
    """Deterministic synthetic parameters mirroring the PyTorch module (f32)."""
    h2 = hidden_dim // 2
    ks = jax.random.split(key, 14)

    def lin(kw, kb, fin, fout):
        bound = 1.0 / np.sqrt(fin)
        w = jax.random.uniform(kw, (fin, fout), jnp.float32, -bound, bound)  # (in, out) = W.T
        b = jax.random.uniform(kb, (fout,), jnp.float32, -bound, bound)
        return w, b

    def bn(kg, kb, km, kv, dim):
        gamma = jax.random.uniform(kg, (dim,), jnp.float32, 0.5, 1.5)
        beta = 0.1 * jax.random.normal(kb, (dim,), jnp.float32)
        rmean = 0.1 * jax.random.normal(km, (dim,), jnp.float32)
        rvar = jax.random.uniform(kv, (dim,), jnp.float32, 0.5, 2.0)
        return gamma, beta, rmean, rvar

    w1, b1 = lin(ks[0], ks[1], input_dim, hidden_dim)
    w2, b2 = lin(ks[2], ks[3], hidden_dim, h2)
    w3, b3 = lin(ks[4], ks[5], h2, output_dim)
    bn1 = bn(ks[6], ks[7], ks[8], ks[9], hidden_dim)
    bn2 = bn(ks[10], ks[11], ks[12], ks[13], h2)
    return dict(w1=w1, b1=b1, bn1=bn1, w2=w2, b2=b2, bn2=bn2, w3=w3, b3=b3)


def fold_and_pad_params(raw):
    """Fold eval-mode BatchNorm into the Linear weights, append the layer-1 shift as an extra
    W1 row (driven by x's appended 1.0 column), zero-pad every feature dim to a multiple of
    128 lanes, cast weights to bf16."""
    def fold(w, b, bn):
        gamma, beta, rmean, rvar = bn
        s = gamma / jnp.sqrt(rvar + BN_EPS)
        return w * s[None, :], (b - rmean) * s + beta

    w1f, c1 = fold(raw["w1"], raw["b1"], raw["bn1"])
    w2f, c2 = fold(raw["w2"], raw["b2"], raw["bn2"])
    w3f, b3 = raw["w3"], raw["b3"]

    # Layer-1 bias / BN shift rides the MXU via an extra weight row.
    w1_aug = jnp.concatenate([w1f, c1[None, :]], axis=0)

    def pad_w(w):
        fin, fout = w.shape
        wp = jnp.zeros((_round_up(fin, LANE), _round_up(fout, LANE)), jnp.float32)
        return wp.at[:fin, :fout].set(w).astype(jnp.bfloat16)

    def pad_c(c):
        d = c.shape[0]
        return jnp.zeros((1, _round_up(d, LANE)), jnp.float32).at[0, :d].set(c)

    # TODO(synk): Dropout is identity (eval semantics); training-mode RNG masks and
    # BatchNorm training-mode batch statistics are not reproduced.
    return (pad_w(w1_aug), pad_w(w2f), pad_c(c2), pad_w(w3f), pad_c(b3))


def reference_forward(x, raw):
    """Pure-JAX f32 reference of the PyTorch module in eval mode."""
    def bn_eval(h, bn):
        gamma, beta, rmean, rvar = bn
        return (h - rmean) / jnp.sqrt(rvar + BN_EPS) * gamma + beta

    h1 = x @ raw["w1"] + raw["b1"]
    h1 = bn_eval(h1, raw["bn1"])
    h1 = jnp.where(h1 >= 0, h1, LEAKY_SLOPE * h1)
    h2 = h1 @ raw["w2"] + raw["b2"]
    h2 = bn_eval(h2, raw["bn2"])
    h2 = jnp.where(h2 >= 0, h2, LEAKY_SLOPE * h2)
    return h2 @ raw["w3"] + raw["b3"]


if __name__ == "__main__":
    key = jax.random.PRNGKey(0)
    k_x, k_p = jax.random.split(key)

    batch, input_dim, hidden_dim, output_dim = 256, 64, 32, 3

    x = jax.random.normal(k_x, (batch, input_dim), jnp.float32)
    raw = init_raw_params(k_p, input_dim, hidden_dim, output_dim)
    kparams = fold_and_pad_params(raw)

    # Auto tile: grid=(1,) with tm=256 on v5e/v6e; grid=(2,) with tm=128 on v7x (2 TCs).
    out = ann_classifier_forward(x, kparams, output_dim)
    out = jax.block_until_ready(out)

    ref = reference_forward(x, raw)
    # bf16 matmul inputs + bf16 output store -> loosened tolerance vs the f32 reference.
    np.testing.assert_allclose(np.asarray(out), np.asarray(ref), rtol=5e-2, atol=5e-2)

    print("KERNEL_OK")
</pallas_src>

<mosaic_0001>
module attributes {stable_mosaic.version = 11 : i64} {
  func.func @_ann_kernel(%arg0: i32, %arg1: memref<256x128xbf16, #tpu.memory_space<vmem>>, %arg2: memref<128x128xbf16, #tpu.memory_space<vmem>>, %arg3: memref<128x128xbf16, #tpu.memory_space<vmem>>, %arg4: memref<1x128xf32, #tpu.memory_space<vmem>>, %arg5: memref<128x128xbf16, #tpu.memory_space<vmem>>, %arg6: memref<1x128xf32, #tpu.memory_space<vmem>>, %arg7: memref<256x128xbf16, #tpu.memory_space<vmem>>) attributes {dimension_semantics = [#tpu.dimension_semantics<parallel>], iteration_bounds = array<i64: 1>, scalar_prefetch = 0 : i64, scratch_operands = 0 : i64, tpu.core_type = #tpu.core_type<tc>, window_params = [{transform_indices = @transform_0, window_bounds = array<i64: 256, 128>}, {pipeline_mode = #tpu.pipeline_mode<synchronous>, transform_indices = @transform_1, window_bounds = array<i64: 128, 128>}, {pipeline_mode = #tpu.pipeline_mode<synchronous>, transform_indices = @transform_2, window_bounds = array<i64: 128, 128>}, {pipeline_mode = #tpu.pipeline_mode<synchronous>, transform_indices = @transform_3, window_bounds = array<i64: 1, 128>}, {pipeline_mode = #tpu.pipeline_mode<synchronous>, transform_indices = @transform_4, window_bounds = array<i64: 128, 128>}, {pipeline_mode = #tpu.pipeline_mode<synchronous>, transform_indices = @transform_5, window_bounds = array<i64: 1, 128>}, {transform_indices = @transform_6, window_bounds = array<i64: 256, 128>}]} {
    %c0 = arith.constant 0 : index
    %c0_0 = arith.constant 0 : index
    %0 = vector.load %arg1[%c0, %c0_0] : memref<256x128xbf16, #tpu.memory_space<vmem>>, vector<256x128xbf16>
    %c0_1 = arith.constant 0 : index
    %c0_2 = arith.constant 0 : index
    %1 = vector.load %arg2[%c0_1, %c0_2] : memref<128x128xbf16, #tpu.memory_space<vmem>>, vector<128x128xbf16>
    %cst = arith.constant dense<0.000000e+00> : vector<256x128xf32>
    %2 = tpu.matmul %0, %1, %cst {dimension_numbers = #tpu.dot_dimension_numbers<[1], [0], [0], [1], [0, 0, 1, 1], [], []>} : vector<256x128xbf16>, vector<128x128xbf16>, vector<256x128xf32> -> vector<256x128xf32>
    %cst_3 = arith.constant 0.00999999977 : f32
    %3 = vector.broadcast %cst_3 : f32 to vector<256x128xf32>
    %4 = arith.mulf %3, %2 : vector<256x128xf32>
    %5 = arith.maximumf %2, %4 : vector<256x128xf32>
    %6 = arith.truncf %5 : vector<256x128xf32> to vector<256x128xbf16>
    %c0_4 = arith.constant 0 : index
    %c0_5 = arith.constant 0 : index
    %7 = vector.load %arg3[%c0_4, %c0_5] : memref<128x128xbf16, #tpu.memory_space<vmem>>, vector<128x128xbf16>
    %cst_6 = arith.constant dense<0.000000e+00> : vector<256x128xf32>
    %8 = tpu.matmul %6, %7, %cst_6 {dimension_numbers = #tpu.dot_dimension_numbers<[1], [0], [0], [1], [0, 0, 1, 1], [], []>} : vector<256x128xbf16>, vector<128x128xbf16>, vector<256x128xf32> -> vector<256x128xf32>
    %c0_7 = arith.constant 0 : index
    %c0_8 = arith.constant 0 : index
    %9 = vector.load %arg4[%c0_7, %c0_8] : memref<1x128xf32, #tpu.memory_space<vmem>>, vector<1x128xf32>
    %10 = vector.broadcast %9 : vector<1x128xf32> to vector<256x128xf32>
    %11 = arith.addf %8, %10 : vector<256x128xf32>
    %cst_9 = arith.constant 0.00999999977 : f32
    %12 = vector.broadcast %cst_9 : f32 to vector<256x128xf32>
    %13 = arith.mulf %12, %11 : vector<256x128xf32>
    %14 = arith.maximumf %11, %13 : vector<256x128xf32>
    %15 = arith.truncf %14 : vector<256x128xf32> to vector<256x128xbf16>
    %c0_10 = arith.constant 0 : index
    %c0_11 = arith.constant 0 : index
    %16 = vector.load %arg5[%c0_10, %c0_11] : memref<128x128xbf16, #tpu.memory_space<vmem>>, vector<128x128xbf16>
    %cst_12 = arith.constant dense<0.000000e+00> : vector<256x128xf32>
    %17 = tpu.matmul %15, %16, %cst_12 {dimension_numbers = #tpu.dot_dimension_numbers<[1], [0], [0], [1], [0, 0, 1, 1], [], []>} : vector<256x128xbf16>, vector<128x128xbf16>, vector<256x128xf32> -> vector<256x128xf32>
    %c0_13 = arith.constant 0 : index
    %c0_14 = arith.constant 0 : index
    %18 = vector.load %arg6[%c0_13, %c0_14] : memref<1x128xf32, #tpu.memory_space<vmem>>, vector<1x128xf32>
    %19 = vector.broadcast %18 : vector<1x128xf32> to vector<256x128xf32>
    %20 = arith.addf %17, %19 : vector<256x128xf32>
    %21 = arith.truncf %20 : vector<256x128xf32> to vector<256x128xbf16>
    %c0_15 = arith.constant 0 : index
    %c0_16 = arith.constant 0 : index
    %22 = vector.load %arg7[%c0_15, %c0_16] : memref<256x128xbf16, #tpu.memory_space<vmem>>, vector<256x128xbf16>
    tpu.vector_store %arg7[%c0_15, %c0_16], %21 {strides = array<i32>} : memref<256x128xbf16, #tpu.memory_space<vmem>>, vector<256x128xbf16>,
    return
  }
  func.func @transform_0(%arg0: i32) -> (i32, i32) {
    %c0_i32 = arith.constant 0 : i32
    %c0_i32_0 = arith.constant 0 : i32
    return %arg0, %c0_i32 : i32, i32
  }
  func.func @transform_1(%arg0: i32) -> (i32, i32) {
    %c0_i32 = arith.constant 0 : i32
    %c0_i32_0 = arith.constant 0 : i32
    %c0_i32_1 = arith.constant 0 : i32
    return %c0_i32, %c0_i32_0 : i32, i32
  }
  func.func @transform_2(%arg0: i32) -> (i32, i32) {
    %c0_i32 = arith.constant 0 : i32
    %c0_i32_0 = arith.constant 0 : i32
    %c0_i32_1 = arith.constant 0 : i32
    return %c0_i32, %c0_i32_0 : i32, i32
  }
  func.func @transform_3(%arg0: i32) -> (i32, i32) {
    %c0_i32 = arith.constant 0 : i32
    %c0_i32_0 = arith.constant 0 : i32
    %c0_i32_1 = arith.constant 0 : i32
    return %c0_i32, %c0_i32_0 : i32, i32
  }
  func.func @transform_4(%arg0: i32) -> (i32, i32) {
    %c0_i32 = arith.constant 0 : i32
    %c0_i32_0 = arith.constant 0 : i32
    %c0_i32_1 = arith.constant 0 : i32
    return %c0_i32, %c0_i32_0 : i32, i32
  }
  func.func @transform_5(%arg0: i32) -> (i32, i32) {
    %c0_i32 = arith.constant 0 : i32
    %c0_i32_0 = arith.constant 0 : i32
    %c0_i32_1 = arith.constant 0 : i32
    return %c0_i32, %c0_i32_0 : i32, i32
  }
  func.func @transform_6(%arg0: i32) -> (i32, i32) {
    %c0_i32 = arith.constant 0 : i32
    %c0_i32_0 = arith.constant 0 : i32
    return %arg0, %c0_i32 : i32, i32
  }
}

</mosaic_0001>

<llo_original>
// kernel: tpu_custom_call.1
$region0: #{tpu_custom_call.1}
  #allocation0 [shape = 'u32[]', space=smem, size = 0x4, offset = 0x4, fixed_abs, tag = 'smem constant byte address 0x4 - core index']
  #allocation1 [shape = 'u32[144,128]{1,0:T(1,128)}', space=vmem, size = 0x12000, scoped, tag = 'internal scratch']
  %s0 = inlined_call_operand.hbm [shape: bf16[256,128], index: 0, kind: input, shape index: {}]
  %s1 = inlined_call_operand.hbm [shape: bf16[128,128], index: 1, kind: input, shape index: {}]
  %s2 = inlined_call_operand.hbm [shape: bf16[128,128], index: 2, kind: input, shape index: {}]
  %s3 = inlined_call_operand.vmem [shape: f32[1,128], index: 3, kind: input, shape index: {}]
  %s4 = inlined_call_operand.hbm [shape: bf16[128,128], index: 4, kind: input, shape index: {}]
  %s5 = inlined_call_operand.vmem [shape: f32[1,128], index: 5, kind: input, shape index: {}]
  %s6 = inlined_call_operand.hbm [shape: bf16[256,128], index: 6, kind: output, shape index: {}]
  %s7 = sld [smem:[#allocation0]]
  $region50: #{tpu_custom_call.1} parent=0
    _
  %s9 = ssub.s32 1, %s7
  %s10 = scalar_select 0, %s9, %s7
  $region1: #{tpu_custom_call.1} parent=0
    #allocation2 [shape = 'u8[65536]{0}', space=vmem, size = 0x10000, scoped, tag = 'input window, operand 0, single buffered']
    #allocation3 [shape = 's32[1]{0}', space=sflag, size = 0x4, scoped, tag = 'scoped memory for tpu_custom_call.1']
    #allocation4 [shape = 's32[1]{0}', space=sflag, size = 0x4, scoped, tag = 'scoped memory for tpu_custom_call.1']
    #allocation5 [shape = 'u8[32768]{0}', space=vmem, size = 0x8000, scoped, tag = 'input window, operand 1, single buffered']
    #allocation6 [shape = 's32[1]{0}', space=sflag, size = 0x4, scoped, tag = 'scoped memory for tpu_custom_call.1']
    #allocation7 [shape = 'u8[32768]{0}', space=vmem, size = 0x8000, scoped, tag = 'input window, operand 2, single buffered']
    #allocation8 [shape = 'u8[32768]{0}', space=vmem, size = 0x8000, scoped, tag = 'input window, operand 4, single buffered']
    #allocation9 [shape = 's32[1]{0}', space=sflag, size = 0x4, scoped, tag = 'scoped memory for tpu_custom_call.1']
    #allocation10 [shape = 'u8[65536]{0}', space=vmem, size = 0x10000, scoped, tag = 'output window, operand 0, single buffered']
    %11 = vsyncpa [#allocation3], 0
    %12 = vsyncpa [#allocation6], 0
    %13 = vsyncpa [#allocation9], 0
    %14 = vsyncpa [#allocation4], 0
    // Predicated region
    $region2: #{tpu_custom_call.1} parent=1 // pred_check
      _
    $region3: #{tpu_custom_call.1} parent=1 // pred_check_branch
      %16 = sbr.rel (0) target = $region5
    $region4: #{tpu_custom_call.1} parent=1 // pred_region
      %s18 = ssub.s32 2048, 2048
      %19 = vsyncadd [#allocation3], %s18
      %s20 = sshll.u32 [#allocation2], 4
      %s21 = int_to_ptr.vmem [resolvable:$true] %s20
      %26 = dma.hbm_to_vmem [thread:$0]  %s0, 2048, %s21, [#allocation3], 64, 64, 4
    $region5: #{tpu_custom_call.1} parent=1 // pred_fallthru
      _
    // Predicated region
    $region6: #{tpu_custom_call.1} parent=1 // pred_check
      _
    $region7: #{tpu_custom_call.1} parent=1 // pred_check_branch
      %28 = sbr.rel (0) target = $region9
    $region8: #{tpu_custom_call.1} parent=1 // pred_region
      %s30 = ssub.s32 1024, 1024
      %31 = vsyncadd [#allocation6], %s30
      %s32 = sshll.u32 [#allocation5], 4
      %s33 = int_to_ptr.vmem [resolvable:$true] %s32
      %38 = dma.hbm_to_vmem [thread:$0]  %s1, 1024, %s33, [#allocation6], 64, 64, 4
    $region9: #{tpu_custom_call.1} parent=1 // pred_fallthru
      _
    // Predicated region
    $region10: #{tpu_custom_call.1} parent=1 // pred_check
      _
    $region11: #{tpu_custom_call.1} parent=1 // pred_check_branch
      %40 = sbr.rel (0) target = $region13
    $region12: #{tpu_custom_call.1} parent=1 // pred_region
      %s42 = ssub.s32 1024, 1024
      %43 = vsyncadd [#allocation6], %s42
      %s44 = sshll.u32 [#allocation7], 4
      %s45 = int_to_ptr.vmem [resolvable:$true] %s44
      %50 = dma.hbm_to_vmem [thread:$0]  %s2, 1024, %s45, [#allocation6], 64, 64, 4
    $region13: #{tpu_custom_call.1} parent=1 // pred_fallthru
      _
    // Predicated region
    $region14: #{tpu_custom_call.1} parent=1 // pred_check
      _
    $region15: #{tpu_custom_call.1} parent=1 // pred_check_branch
      %52 = sbr.rel (0) target = $region17
    $region16: #{tpu_custom_call.1} parent=1 // pred_region
      _
    $region17: #{tpu_custom_call.1} parent=1 // pred_fallthru
      _
    // Predicated region
    $region18: #{tpu_custom_call.1} parent=1 // pred_check
      _
    $region19: #{tpu_custom_call.1} parent=1 // pred_check_branch
      %54 = sbr.rel (0) target = $region21
    $region20: #{tpu_custom_call.1} parent=1 // pred_region
      %s56 = ssub.s32 1024, 1024
      %57 = vsyncadd [#allocation9], %s56
      %s58 = sshll.u32 [#allocation8], 4
      %s59 = int_to_ptr.vmem [resolvable:$true] %s58
      %64 = dma.hbm_to_vmem [thread:$0]  %s4, 1024, %s59, [#allocation9], 64, 64, 4
    $region21: #{tpu_custom_call.1} parent=1 // pred_fallthru
      _
    // Predicated region
    $region22: #{tpu_custom_call.1} parent=1 // pred_check
      _
    $region23: #{tpu_custom_call.1} parent=1 // pred_check_branch
      %66 = sbr.rel (0) target = $region25
    $region24: #{tpu_custom_call.1} parent=1 // pred_region
      _
    $region25: #{tpu_custom_call.1} parent=1 // pred_fallthru
      _
    // Predicated region
    $region26: #{tpu_custom_call.1} parent=1 // pred_check
      _
    $region27: #{tpu_custom_call.1} parent=1 // pred_check_branch
      %68 = sbr.rel (0) target = $region29
    $region28: #{tpu_custom_call.1} parent=1 // pred_region
      %69 = dma.done [#allocation3], 2048
    $region29: #{tpu_custom_call.1} parent=1 // pred_fallthru
      _
    // Predicated region
    $region30: #{tpu_custom_call.1} parent=1 // pred_check
      _
    $region31: #{tpu_custom_call.1} parent=1 // pred_check_branch
      %71 = sbr.rel (0) target = $region33
    $region32: #{tpu_custom_call.1} parent=1 // pred_region
      %72 = dma.done [#allocation6], 1024
    $region33: #{tpu_custom_call.1} parent=1 // pred_fallthru
      _
    // Predicated region
    $region34: #{tpu_custom_call.1} parent=1 // pred_check
      _
    $region35: #{tpu_custom_call.1} parent=1 // pred_check_branch
      %74 = sbr.rel (0) target = $region37
    $region36: #{tpu_custom_call.1} parent=1 // pred_region
      %75 = dma.done [#allocation6], 1024
    $region37: #{tpu_custom_call.1} parent=1 // pred_fallthru
      _
    // Predicated region
    $region38: #{tpu_custom_call.1} parent=1 // pred_check
      _
    $region39: #{tpu_custom_call.1} parent=1 // pred_check_branch
      %77 = sbr.rel (0) target = $region41
    $region40: #{tpu_custom_call.1} parent=1 // pred_region
      %78 = dma.done [#allocation9], 1024
    $region41: #{tpu_custom_call.1} parent=1 // pred_fallthru
      _
    %v80 = vld [vmem:[#allocation2] sm:$0xf]
    %v81 = vld [vmem:[#allocation2 + $0x4] sm:$0xf]
    %v82 = vld [vmem:[#allocation2 + $0x8] sm:$0xf]
    %v83 = vld [vmem:[#allocation2 + $0xc] sm:$0xf]
    %v84 = vld [vmem:[#allocation2 + $0x10] sm:$0xf]
    %v85 = vld [vmem:[#allocation2 + $0x14] sm:$0xf]
    %v86 = vld [vmem:[#allocation2 + $0x18] sm:$0xf]
    %v87 = vld [vmem:[#allocation2 + $0x1c] sm:$0xf]
    %v88 = vld [vmem:[#allocation2 + $0x20] sm:$0xf]
    %v89 = vld [vmem:[#allocation2 + $0x24] sm:$0xf]
    %v90 = vld [vmem:[#allocation2 + $0x28] sm:$0xf]
    %v91 = vld [vmem:[#allocation2 + $0x2c] sm:$0xf]
    %v92 = vld [vmem:[#allocation2 + $0x30] sm:$0xf]
    %v93 = vld [vmem:[#allocation2 + $0x34] sm:$0xf]
    %v94 = vld [vmem:[#allocation2 + $0x38] sm:$0xf]
    %v95 = vld [vmem:[#allocation2 + $0x3c] sm:$0xf]
    %v96 = vld [vmem:[#allocation2 + $0x40] sm:$0xf]
    %v97 = vld [vmem:[#allocation2 + $0x44] sm:$0xf]
    %v98 = vld [vmem:[#allocation2 + $0x48] sm:$0xf]
    %v99 = vld [vmem:[#allocation2 + $0x4c] sm:$0xf]
    %v100 = vld [vmem:[#allocation2 + $0x50] sm:$0xf]
    %v101 = vld [vmem:[#allocation2 + $0x54] sm:$0xf]
    %v102 = vld [vmem:[#allocation2 + $0x58] sm:$0xf]
    %v103 = vld [vmem:[#allocation2 + $0x5c] sm:$0xf]
    %v104 = vld [vmem:[#allocation2 + $0x60] sm:$0xf]
    %v105 = vld [vmem:[#allocation2 + $0x64] sm:$0xf]
    %v106 = vld [vmem:[#allocation2 + $0x68] sm:$0xf]
    %v107 = vld [vmem:[#allocation2 + $0x6c] sm:$0xf]
    %v108 = vld [vmem:[#allocation2 + $0x70] sm:$0xf]
    %v109 = vld [vmem:[#allocation2 + $0x74] sm:$0xf]
    %v110 = vld [vmem:[#allocation2 + $0x78] sm:$0xf]
    %v111 = vld [vmem:[#allocation2 + $0x7c] sm:$0xf]
    %v112 = vld [vmem:[#allocation5] sm:$0xf]
    %v113 = vld [vmem:[#allocation5 + $0x4] sm:$0xf]
    %v114 = vld [vmem:[#allocation5 + $0x8] sm:$0xf]
    %v115 = vld [vmem:[#allocation5 + $0xc] sm:$0xf]
    %v116 = vld [vmem:[#allocation5 + $0x10] sm:$0xf]
    %v117 = vld [vmem:[#allocation5 + $0x14] sm:$0xf]
    %v118 = vld [vmem:[#allocation5 + $0x18] sm:$0xf]
    %v119 = vld [vmem:[#allocation5 + $0x1c] sm:$0xf]
    %v120 = vld [vmem:[#allocation5 + $0x20] sm:$0xf]
    %v121 = vld [vmem:[#allocation5 + $0x24] sm:$0xf]
    %v122 = vld [vmem:[#allocation5 + $0x28] sm:$0xf]
    %v123 = vld [vmem:[#allocation5 + $0x2c] sm:$0xf]
    %v124 = vld [vmem:[#allocation5 + $0x30] sm:$0xf]
    %v125 = vld [vmem:[#allocation5 + $0x34] sm:$0xf]
    %v126 = vld [vmem:[#allocation5 + $0x38] sm:$0xf]
    %v127 = vld [vmem:[#allocation5 + $0x3c] sm:$0xf]
    %v160 = vunpack.c.l.b16 %v80
    %v161 = vunpack.c.l.b16 %v81
    %v162 = vunpack.c.l.b16 %v82
    %v163 = vunpack.c.l.b16 %v83
    %v164 = vunpack.c.l.b16 %v84
    %v165 = vunpack.c.l.b16 %v85
    %v166 = vunpack.c.l.b16 %v86
    %v167 = vunpack.c.l.b16 %v87
    %v168 = vunpack.c.l.b16 %v88
    %v169 = vunpack.c.l.b16 %v89
    %v170 = vunpack.c.l.b16 %v90
    %v171 = vunpack.c.l.b16 %v91
    %v172 = vunpack.c.l.b16 %v92
    %v173 = vunpack.c.l.b16 %v93
    %v174 = vunpack.c.l.b16 %v94
    %v175 = vunpack.c.l.b16 %v95
    %v176 = vunpack.c.l.b16 %v96
    %v177 = vunpack.c.l.b16 %v97
    %v178 = vunpack.c.l.b16 %v98
    %v179 = vunpack.c.l.b16 %v99
    %v180 = vunpack.c.l.b16 %v100
    %v181 = vunpack.c.l.b16 %v101
    %v182 = vunpack.c.l.b16 %v102
    %v183 = vunpack.c.l.b16 %v103
    %v184 = vunpack.c.l.b16 %v104
    %v185 = vunpack.c.l.b16 %v105
    %v186 = vunpack.c.l.b16 %v106
    %v187 = vunpack.c.l.b16 %v107
    %v188 = vunpack.c.l.b16 %v108
    %v189 = vunpack.c.l.b16 %v109
    %v190 = vunpack.c.l.b16 %v110
    %v191 = vunpack.c.l.b16 %v111
    %v192 = vpack.c.b16 %v161, %v160
    %v193 = vpack.c.b16 %v163, %v162
    %v194 = vpack.c.b16 %v165, %v164
    %v195 = vpack.c.b16 %v167, %v166
    %v196 = vpack.c.b16 %v169, %v168
    %v197 = vpack.c.b16 %v171, %v170
    %v198 = vpack.c.b16 %v173, %v172
    %v199 = vpack.c.b16 %v175, %v174
    %v200 = vpack.c.b16 %v177, %v176
    %v201 = vpack.c.b16 %v179, %v178
    %v202 = vpack.c.b16 %v181, %v180
    %v203 = vpack.c.b16 %v183, %v182
    %v204 = vpack.c.b16 %v185, %v184
    %v205 = vpack.c.b16 %v187, %v186
    %v206 = vpack.c.b16 %v189, %v188
    %v207 = vpack.c.b16 %v191, %v190
    %v240 = vunpack.c.l.b16 %v112
    %v241 = vunpack.c.l.b16 %v113
    %v242 = vunpack.c.l.b16 %v114
    %v243 = vunpack.c.l.b16 %v115
    %v244 = vunpack.c.l.b16 %v116
    %v245 = vunpack.c.l.b16 %v117
    %v246 = vunpack.c.l.b16 %v118
    %v247 = vunpack.c.l.b16 %v119
    %v248 = vunpack.c.l.b16 %v120
    %v249 = vunpack.c.l.b16 %v121
    %v250 = vunpack.c.l.b16 %v122
    %v251 = vunpack.c.l.b16 %v123
    %v252 = vunpack.c.l.b16 %v124
    %v253 = vunpack.c.l.b16 %v125
    %v254 = vunpack.c.l.b16 %v126
    %v255 = vunpack.c.l.b16 %v127
    %v256 = vpack.c.b16 %v241, %v240
    %v257 = vpack.c.b16 %v243, %v242
    %v258 = vpack.c.b16 %v245, %v244
    %v259 = vpack.c.b16 %v247, %v246
    %v260 = vpack.c.b16 %v249, %v248
    %v261 = vpack.c.b16 %v251, %v250
    %v262 = vpack.c.b16 %v253, %v252
    %v263 = vpack.c.b16 %v255, %v254
    %272 = vmatprep.subr.bf16.mxu0 0
    %273 = vmatpush1.bf16.msra.mxu0 %v263
    %274 = vmatprep.subr.bf16.mxu0 0
    %275 = vmatpush1.bf16.msra.mxu0 %v262
    %276 = vmatprep.subr.bf16.mxu0 0
    %277 = vmatpush1.bf16.msra.mxu0 %v261
    %278 = vmatprep.subr.bf16.mxu0 0
    %279 = vmatpush1.bf16.msra.mxu0 %v260
    %280 = vmatprep.subr.bf16.mxu0 0
    %281 = vmatpush1.bf16.msra.mxu0 %v259
    %282 = vmatprep.subr.bf16.mxu0 0
    %283 = vmatpush1.bf16.msra.mxu0 %v258
    %284 = vmatprep.subr.bf16.mxu0 0
    %285 = vmatpush1.bf16.msra.mxu0 %v257
    %286 = vmatprep.subr.bf16.mxu0 0
    %287 = vmatpush1.bf16.msra.mxu0 %v256
    %288 = vmatprep.subr.bf16.mxu0 0
    %289 = vmatpush2.bf16.msra.mxu0 0
    %290 = vmatprep.subr.bf16.mxu0 0
    %291 = vmatpush2.bf16.msra.mxu0 0
    %292 = vmatprep.subr.bf16.mxu0 0
    %293 = vmatpush2.bf16.msra.mxu0 0
    %294 = vmatprep.subr.bf16.mxu0 0
    %295 = vmatpush2.bf16.msra.mxu0 0
    %296 = vmatprep.subr.bf16.mxu0 0
    %297 = vmatpush2.bf16.msra.mxu0 0
    %298 = vmatprep.subr.bf16.mxu0 0
    %299 = vmatpush2.bf16.msra.mxu0 0
    %300 = vmatprep.subr.bf16.mxu0 0
    %301 = vmatpush2.bf16.msra.mxu0 0
    %302 = vmatprep.subr.bf16.mxu0 0
    %303 = vmatpush2.bf16.msra.mxu0 0
    %304 = vmatprep.mubr.bf16.mxu0 0
    %305 = vmatmul.mubr.bf16.gmra.mxu0 %v192
    %v306 = vpop.f32.mrf.mxu0
    %v307 = vadd.f32 0.0, %v306
    %v308 = vpop.f32.mrf.mxu0
    %v309 = vpop.f32.mrf.mxu0
    %v310 = vadd.f32 0.0, %v309
    %v311 = vpop.f32.mrf.mxu0
    %312 = vmatprep.mubr.bf16.mxu0 0
    %313 = vmatmul.mubr.bf16.gmra.mxu0 %v193
    %v314 = vpop.f32.mrf.mxu0
    %v315 = vadd.f32 0.0, %v314
    %v316 = vpop.f32.mrf.mxu0
    %v317 = vpop.f32.mrf.mxu0
    %v318 = vadd.f32 0.0, %v317
    %v319 = vpop.f32.mrf.mxu0
    %320 = vmatprep.mubr.bf16.mxu0 0
    %321 = vmatmul.mubr.bf16.gmra.mxu0 %v194
    %v322 = vpop.f32.mrf.mxu0
    %v323 = vadd.f32 0.0, %v322
    %v324 = vpop.f32.mrf.mxu0
    %v325 = vpop.f32.mrf.mxu0
    %v326 = vadd.f32 0.0, %v325
    %v327 = vpop.f32.mrf.mxu0
    %328 = vmatprep.mubr.bf16.mxu0 0
    %329 = vmatmul.mubr.bf16.gmra.mxu0 %v195
    %v330 = vpop.f32.mrf.mxu0
    %v331 = vadd.f32 0.0, %v330
    %v332 = vpop.f32.mrf.mxu0
    %v333 = vpop.f32.mrf.mxu0
    %v334 = vadd.f32 0.0, %v333
    %v335 = vpop.f32.mrf.mxu0
    %336 = vmatprep.mubr.bf16.mxu0 0
    %337 = vmatmul.mubr.bf16.gmra.mxu0 %v196
    %v338 = vpop.f32.mrf.mxu0
    %v339 = vadd.f32 0.0, %v338
    %v340 = vpop.f32.mrf.mxu0
    %v341 = vpop.f32.mrf.mxu0
    %v342 = vadd.f32 0.0, %v341
    %v343 = vpop.f32.mrf.mxu0
    %344 = vmatprep.mubr.bf16.mxu0 0
    %345 = vmatmul.mubr.bf16.gmra.mxu0 %v197
    %v346 = vpop.f32.mrf.mxu0
    %v347 = vadd.f32 0.0, %v346
    %v348 = vpop.f32.mrf.mxu0
    %v349 = vpop.f32.mrf.mxu0
    %v350 = vadd.f32 0.0, %v349
    %v351 = vpop.f32.mrf.mxu0
    %352 = vmatprep.mubr.bf16.mxu0 0
    %353 = vmatmul.mubr.bf16.gmra.mxu0 %v198
    %v354 = vpop.f32.mrf.mxu0
    %v355 = vadd.f32 0.0, %v354
    %v356 = vpop.f32.mrf.mxu0
    %v357 = vpop.f32.mrf.mxu0
    %v358 = vadd.f32 0.0, %v357
    %v359 = vpop.f32.mrf.mxu0
    %360 = vmatprep.mubr.bf16.mxu0 0
    %361 = vmatmul.mubr.bf16.gmra.mxu0 %v199
    %v362 = vpop.f32.mrf.mxu0
    %v363 = vadd.f32 0.0, %v362
    %v364 = vpop.f32.mrf.mxu0
    %v365 = vpop.f32.mrf.mxu0
    %v366 = vadd.f32 0.0, %v365
    %v367 = vpop.f32.mrf.mxu0
    %368 = vmatprep.mubr.bf16.mxu0 0
    %369 = vmatmul.mubr.bf16.gmra.mxu0 %v200
    %v370 = vpop.f32.mrf.mxu0
    %v371 = vadd.f32 0.0, %v370
    %v372 = vpop.f32.mrf.mxu0
    %v373 = vpop.f32.mrf.mxu0
    %v374 = vadd.f32 0.0, %v373
    %v375 = vpop.f32.mrf.mxu0
    %376 = vmatprep.mubr.bf16.mxu0 0
    %377 = vmatmul.mubr.bf16.gmra.mxu0 %v201
    %v378 = vpop.f32.mrf.mxu0
    %v379 = vadd.f32 0.0, %v378
    %v380 = vpop.f32.mrf.mxu0
    %v381 = vpop.f32.mrf.mxu0
    %v382 = vadd.f32 0.0, %v381
    %v383 = vpop.f32.mrf.mxu0
    %384 = vmatprep.mubr.bf16.mxu0 0
    %385 = vmatmul.mubr.bf16.gmra.mxu0 %v202
    %v386 = vpop.f32.mrf.mxu0
    %v387 = vadd.f32 0.0, %v386
    %v388 = vpop.f32.mrf.mxu0
    %v389 = vpop.f32.mrf.mxu0
    %v390 = vadd.f32 0.0, %v389
    %v391 = vpop.f32.mrf.mxu0
    %392 = vmatprep.mubr.bf16.mxu0 0
    %393 = vmatmul.mubr.bf16.gmra.mxu0 %v203
    %v394 = vpop.f32.mrf.mxu0
    %v395 = vadd.f32 0.0, %v394
    %v396 = vpop.f32.mrf.mxu0
    %v397 = vpop.f32.mrf.mxu0
    %v398 = vadd.f32 0.0, %v397
    %v399 = vpop.f32.mrf.mxu0
    %400 = vmatprep.mubr.bf16.mxu0 0
    %401 = vmatmul.mubr.bf16.gmra.mxu0 %v204
    %v402 = vpop.f32.mrf.mxu0
    %v403 = vadd.f32 0.0, %v402
    %v404 = vpop.f32.mrf.mxu0
    %v405 = vpop.f32.mrf.mxu0
    %v406 = vadd.f32 0.0, %v405
    %v407 = vpop.f32.mrf.mxu0
    %408 = vmatprep.mubr.bf16.mxu0 0
    %409 = vmatmul.mubr.bf16.gmra.mxu0 %v205
    %v410 = vpop.f32.mrf.mxu0
    %v411 = vadd.f32 0.0, %v410
    %v412 = vpop.f32.mrf.mxu0
    %v413 = vpop.f32.mrf.mxu0
    %v414 = vadd.f32 0.0, %v413
    %v415 = vpop.f32.mrf.mxu0
    %416 = vmatprep.mubr.bf16.mxu0 0
    %417 = vmatmul.mubr.bf16.gmra.mxu0 %v206
    %v418 = vpop.f32.mrf.mxu0
    %v419 = vadd.f32 0.0, %v418
    %v420 = vpop.f32.mrf.mxu0
    %v421 = vpop.f32.mrf.mxu0
    %v422 = vadd.f32 0.0, %v421
    %v423 = vpop.f32.mrf.mxu0
    %424 = vmatprep.mubr.bf16.mxu0 0
    %425 = vmatmul.mubr.bf16.gmra.mxu0 %v207
    %v426 = vpop.f32.mrf.mxu0
    %v427 = vadd.f32 0.0, %v426
    %v428 = vpop.f32.mrf.mxu0
    %v429 = vpop.f32.mrf.mxu0
    %v430 = vadd.f32 0.0, %v429
    %v431 = vpop.f32.mrf.mxu0
    %432 = vdwg.mxu0
    %v433 = vmul.f32 %v307, 0.01
    %v434 = vmul.f32 %v310, 0.01
    %v435 = vmul.f32 %v315, 0.01
    %v436 = vmul.f32 %v318, 0.01
    %v437 = vmul.f32 %v323, 0.01
    %v438 = vmul.f32 %v326, 0.01
    %v439 = vmul.f32 %v331, 0.01
    %v440 = vmul.f32 %v334, 0.01
    %v441 = vmul.f32 %v339, 0.01
    %v442 = vmul.f32 %v342, 0.01
    %v443 = vmul.f32 %v347, 0.01
    %v444 = vmul.f32 %v350, 0.01
    %v445 = vmul.f32 %v355, 0.01
    %v446 = vmul.f32 %v358, 0.01
    %v447 = vmul.f32 %v363, 0.01
    %v448 = vmul.f32 %v366, 0.01
    %v449 = vmul.f32 %v371, 0.01
    %v450 = vmul.f32 %v374, 0.01
    %v451 = vmul.f32 %v379, 0.01
    %v452 = vmul.f32 %v382, 0.01
    %v453 = vmul.f32 %v387, 0.01
    %v454 = vmul.f32 %v390, 0.01
    %v455 = vmul.f32 %v395, 0.01
    %v456 = vmul.f32 %v398, 0.01
    %v457 = vmul.f32 %v403, 0.01
    %v458 = vmul.f32 %v406, 0.01
    %v459 = vmul.f32 %v411, 0.01
    %v460 = vmul.f32 %v414, 0.01
    %v461 = vmul.f32 %v419, 0.01
    %v462 = vmul.f32 %v422, 0.01
    %v463 = vmul.f32 %v427, 0.01
    %v464 = vmul.f32 %v430, 0.01
    %v465 = vmax.f32 %v307, %v433
    %v466 = vmax.f32 %v310, %v434
    %v467 = vmax.f32 %v315, %v435
    %v468 = vmax.f32 %v318, %v436
    %v469 = vmax.f32 %v323, %v437
    %v470 = vmax.f32 %v326, %v438
    %v471 = vmax.f32 %v331, %v439
    %v472 = vmax.f32 %v334, %v440
    %v473 = vmax.f32 %v339, %v441
    %v474 = vmax.f32 %v342, %v442
    %v475 = vmax.f32 %v347, %v443
    %v476 = vmax.f32 %v350, %v444
    %v477 = vmax.f32 %v355, %v445
    %v478 = vmax.f32 %v358, %v446
    %v479 = vmax.f32 %v363, %v447
    %v480 = vmax.f32 %v366, %v448
    %v481 = vmax.f32 %v371, %v449
    %v482 = vmax.f32 %v374, %v450
    %v483 = vmax.f32 %v379, %v451
    %v484 = vmax.f32 %v382, %v452
    %v485 = vmax.f32 %v387, %v453
    %v486 = vmax.f32 %v390, %v454
    %v487 = vmax.f32 %v395, %v455
    %v488 = vmax.f32 %v398, %v456
    %v489 = vmax.f32 %v403, %v457
    %v490 = vmax.f32 %v406, %v458
    %v491 = vmax.f32 %v411, %v459
    %v492 = vmax.f32 %v414, %v460
    %v493 = vmax.f32 %v419, %v461
    %v494 = vmax.f32 %v422, %v462
    %v495 = vmax.f32 %v427, %v463
    %v496 = vmax.f32 %v430, %v464
    %v497 = vpack.c.bf16 %v466, %v465
    %v498 = vpack.c.bf16 %v468, %v467
    %v499 = vpack.c.bf16 %v470, %v469
    %v500 = vpack.c.bf16 %v472, %v471
    %v501 = vpack.c.bf16 %v474, %v473
    %v502 = vpack.c.bf16 %v476, %v475
    %v503 = vpack.c.bf16 %v478, %v477
    %v504 = vpack.c.bf16 %v480, %v479
    %v505 = vpack.c.bf16 %v482, %v481
    %v506 = vpack.c.bf16 %v484, %v483
    %v507 = vpack.c.bf16 %v486, %v485
    %v508 = vpack.c.bf16 %v488, %v487
    %v509 = vpack.c.bf16 %v490, %v489
    %v510 = vpack.c.bf16 %v492, %v491
    %v511 = vpack.c.bf16 %v494, %v493
    %v512 = vpack.c.bf16 %v496, %v495
    %v513 = vld [vmem:[#allocation7] sm:$0xf]
    %v514 = vld [vmem:[#allocation7 + $0x4] sm:$0xf]
    %v515 = vld [vmem:[#allocation7 + $0x8] sm:$0xf]
    %v516 = vld [vmem:[#allocation7 + $0xc] sm:$0xf]
    %v517 = vld [vmem:[#allocation7 + $0x10] sm:$0xf]
    %v518 = vld [vmem:[#allocation7 + $0x14] sm:$0xf]
    %v519 = vld [vmem:[#allocation7 + $0x18] sm:$0xf]
    %v520 = vld [vmem:[#allocation7 + $0x1c] sm:$0xf]
    %v521 = vld [vmem:[#allocation7 + $0x20] sm:$0xf]
    %v522 = vld [vmem:[#allocation7 + $0x24] sm:$0xf]
    %v523 = vld [vmem:[#allocation7 + $0x28] sm:$0xf]
    %v524 = vld [vmem:[#allocation7 + $0x2c] sm:$0xf]
    %v525 = vld [vmem:[#allocation7 + $0x30] sm:$0xf]
    %v526 = vld [vmem:[#allocation7 + $0x34] sm:$0xf]
    %v527 = vld [vmem:[#allocation7 + $0x38] sm:$0xf]
    %v528 = vld [vmem:[#allocation7 + $0x3c] sm:$0xf]
    %v529 = vld [vmem:[%s3] sm:$0x1]
    %v531 = vlaneseq
    %v532 = vshrl.u32 %v531, 7
    %v533 = vsub.s32 0, %v532
    %v534 = vrot.slane %v529, %v533
    %v552 = vunpack.c.l.b16 %v513
    %v553 = vunpack.c.l.b16 %v514
    %v554 = vunpack.c.l.b16 %v515
    %v555 = vunpack.c.l.b16 %v516
    %v556 = vunpack.c.l.b16 %v517
    %v557 = vunpack.c.l.b16 %v518
    %v558 = vunpack.c.l.b16 %v519
    %v559 = vunpack.c.l.b16 %v520
    %v560 = vunpack.c.l.b16 %v521
    %v561 = vunpack.c.l.b16 %v522
    %v562 = vunpack.c.l.b16 %v523
    %v563 = vunpack.c.l.b16 %v524
    %v564 = vunpack.c.l.b16 %v525
    %v565 = vunpack.c.l.b16 %v526
    %v566 = vunpack.c.l.b16 %v527
    %v567 = vunpack.c.l.b16 %v528
    %v568 = vpack.c.b16 %v553, %v552
    %v569 = vpack.c.b16 %v555, %v554
    %v570 = vpack.c.b16 %v557, %v556
    %v571 = vpack.c.b16 %v559, %v558
    %v572 = vpack.c.b16 %v561, %v560
    %v573 = vpack.c.b16 %v563, %v562
    %v574 = vpack.c.b16 %v565, %v564
    %v575 = vpack.c.b16 %v567, %v566
    %584 = vmatprep.subr.bf16.mxu0 0
    %585 = vmatpush1.bf16.msra.mxu0 %v575
    %586 = vmatprep.subr.bf16.mxu0 0
    %587 = vmatpush1.bf16.msra.mxu0 %v574
    %588 = vmatprep.subr.bf16.mxu0 0
    %589 = vmatpush1.bf16.msra.mxu0 %v573
    %590 = vmatprep.subr.bf16.mxu0 0
    %591 = vmatpush1.bf16.msra.mxu0 %v572
    %592 = vmatprep.subr.bf16.mxu0 0
    %593 = vmatpush1.bf16.msra.mxu0 %v571
    %594 = vmatprep.subr.bf16.mxu0 0
    %595 = vmatpush1.bf16.msra.mxu0 %v570
    %596 = vmatprep.subr.bf16.mxu0 0
    %597 = vmatpush1.bf16.msra.mxu0 %v569
    %598 = vmatprep.subr.bf16.mxu0 0
    %599 = vmatpush1.bf16.msra.mxu0 %v568
    %600 = vmatprep.subr.bf16.mxu0 0
    %601 = vmatpush2.bf16.msra.mxu0 0
    %602 = vmatprep.subr.bf16.mxu0 0
    %603 = vmatpush2.bf16.msra.mxu0 0
    %604 = vmatprep.subr.bf16.mxu0 0
    %605 = vmatpush2.bf16.msra.mxu0 0
    %606 = vmatprep.subr.bf16.mxu0 0
    %607 = vmatpush2.bf16.msra.mxu0 0
    %608 = vmatprep.subr.bf16.mxu0 0
    %609 = vmatpush2.bf16.msra.mxu0 0
    %610 = vmatprep.subr.bf16.mxu0 0
    %611 = vmatpush2.bf16.msra.mxu0 0
    %612 = vmatprep.subr.bf16.mxu0 0
    %613 = vmatpush2.bf16.msra.mxu0 0
    %614 = vmatprep.subr.bf16.mxu0 0
    %615 = vmatpush2.bf16.msra.mxu0 0
    %616 = vmatprep.mubr.bf16.mxu0 0
    %617 = vmatmul.mubr.bf16.gmra.mxu0 %v497
    %v618 = vpop.f32.mrf.mxu0
    %v619 = vadd.f32 %v534, %v618
    %v620 = vpop.f32.mrf.mxu0
    %v621 = vpop.f32.mrf.mxu0
    %v622 = vadd.f32 %v534, %v621
    %v623 = vpop.f32.mrf.mxu0
    %624 = vmatprep.mubr.bf16.mxu0 0
    %625 = vmatmul.mubr.bf16.gmra.mxu0 %v498
    %v626 = vpop.f32.mrf.mxu0
    %v627 = vadd.f32 %v534, %v626
    %v628 = vpop.f32.mrf.mxu0
    %v629 = vpop.f32.mrf.mxu0
    %v630 = vadd.f32 %v534, %v629
    %v631 = vpop.f32.mrf.mxu0
    %632 = vmatprep.mubr.bf16.mxu0 0
    %633 = vmatmul.mubr.bf16.gmra.mxu0 %v499
    %v634 = vpop.f32.mrf.mxu0
    %v635 = vadd.f32 %v534, %v634
    %v636 = vpop.f32.mrf.mxu0
    %v637 = vpop.f32.mrf.mxu0
    %v638 = vadd.f32 %v534, %v637
    %v639 = vpop.f32.mrf.mxu0
    %640 = vmatprep.mubr.bf16.mxu0 0
    %641 = vmatmul.mubr.bf16.gmra.mxu0 %v500
    %v642 = vpop.f32.mrf.mxu0
    %v643 = vadd.f32 %v534, %v642
    %v644 = vpop.f32.mrf.mxu0
    %v645 = vpop.f32.mrf.mxu0
    %v646 = vadd.f32 %v534, %v645
    %v647 = vpop.f32.mrf.mxu0
    %648 = vmatprep.mubr.bf16.mxu0 0
    %649 = vmatmul.mubr.bf16.gmra.mxu0 %v501
    %v650 = vpop.f32.mrf.mxu0
    %v651 = vadd.f32 %v534, %v650
    %v652 = vpop.f32.mrf.mxu0
    %v653 = vpop.f32.mrf.mxu0
    %v654 = vadd.f32 %v534, %v653
    %v655 = vpop.f32.mrf.mxu0
    %656 = vmatprep.mubr.bf16.mxu0 0
    %657 = vmatmul.mubr.bf16.gmra.mxu0 %v502
    %v658 = vpop.f32.mrf.mxu0
    %v659 = vadd.f32 %v534, %v658
    %v660 = vpop.f32.mrf.mxu0
    %v661 = vpop.f32.mrf.mxu0
    %v662 = vadd.f32 %v534, %v661
    %v663 = vpop.f32.mrf.mxu0
    %664 = vmatprep.mubr.bf16.mxu0 0
    %665 = vmatmul.mubr.bf16.gmra.mxu0 %v503
    %v666 = vpop.f32.mrf.mxu0
    %v667 = vadd.f32 %v534, %v666
    %v668 = vpop.f32.mrf.mxu0
    %v669 = vpop.f32.mrf.mxu0
    %v670 = vadd.f32 %v534, %v669
    %v671 = vpop.f32.mrf.mxu0
    %672 = vmatprep.mubr.bf16.mxu0 0
    %673 = vmatmul.mubr.bf16.gmra.mxu0 %v504
    %v674 = vpop.f32.mrf.mxu0
    %v675 = vadd.f32 %v534, %v674
    %v676 = vpop.f32.mrf.mxu0
    %v677 = vpop.f32.mrf.mxu0
    %v678 = vadd.f32 %v534, %v677
    %v679 = vpop.f32.mrf.mxu0
    %680 = vmatprep.mubr.bf16.mxu0 0
    %681 = vmatmul.mubr.bf16.gmra.mxu0 %v505
    %v682 = vpop.f32.mrf.mxu0
    %v683 = vadd.f32 %v534, %v682
    %v684 = vpop.f32.mrf.mxu0
    %v685 = vpop.f32.mrf.mxu0
    %v686 = vadd.f32 %v534, %v685
    %v687 = vpop.f32.mrf.mxu0
    %688 = vmatprep.mubr.bf16.mxu0 0
    %689 = vmatmul.mubr.bf16.gmra.mxu0 %v506
    %v690 = vpop.f32.mrf.mxu0
    %v691 = vadd.f32 %v534, %v690
    %v692 = vpop.f32.mrf.mxu0
    %v693 = vpop.f32.mrf.mxu0
    %v694 = vadd.f32 %v534, %v693
    %v695 = vpop.f32.mrf.mxu0
    %696 = vmatprep.mubr.bf16.mxu0 0
    %697 = vmatmul.mubr.bf16.gmra.mxu0 %v507
    %v698 = vpop.f32.mrf.mxu0
    %v699 = vadd.f32 %v534, %v698
    %v700 = vpop.f32.mrf.mxu0
    %v701 = vpop.f32.mrf.mxu0
    %v702 = vadd.f32 %v534, %v701
    %v703 = vpop.f32.mrf.mxu0
    %704 = vmatprep.mubr.bf16.mxu0 0
    %705 = vmatmul.mubr.bf16.gmra.mxu0 %v508
    %v706 = vpop.f32.mrf.mxu0
    %v707 = vadd.f32 %v534, %v706
    %v708 = vpop.f32.mrf.mxu0
    %v709 = vpop.f32.mrf.mxu0
    %v710 = vadd.f32 %v534, %v709
    %v711 = vpop.f32.mrf.mxu0
    %712 = vmatprep.mubr.bf16.mxu0 0
    %713 = vmatmul.mubr.bf16.gmra.mxu0 %v509
    %v714 = vpop.f32.mrf.mxu0
    %v715 = vadd.f32 %v534, %v714
    %v716 = vpop.f32.mrf.mxu0
    %v717 = vpop.f32.mrf.mxu0
    %v718 = vadd.f32 %v534, %v717
    %v719 = vpop.f32.mrf.mxu0
    %720 = vmatprep.mubr.bf16.mxu0 0
    %721 = vmatmul.mubr.bf16.gmra.mxu0 %v510
    %v722 = vpop.f32.mrf.mxu0
    %v723 = vadd.f32 %v534, %v722
    %v724 = vpop.f32.mrf.mxu0
    %v725 = vpop.f32.mrf.mxu0
    %v726 = vadd.f32 %v534, %v725
    %v727 = vpop.f32.mrf.mxu0
    %728 = vmatprep.mubr.bf16.mxu0 0
    %729 = vmatmul.mubr.bf16.gmra.mxu0 %v511
    %v730 = vpop.f32.mrf.mxu0
    %v731 = vadd.f32 %v534, %v730
    %v732 = vpop.f32.mrf.mxu0
    %v733 = vpop.f32.mrf.mxu0
    %v734 = vadd.f32 %v534, %v733
    %v735 = vpop.f32.mrf.mxu0
    %736 = vmatprep.mubr.bf16.mxu0 0
    %737 = vmatmul.mubr.bf16.gmra.mxu0 %v512
    %v738 = vpop.f32.mrf.mxu0
    %v739 = vadd.f32 %v534, %v738
    %v740 = vpop.f32.mrf.mxu0
    %v741 = vpop.f32.mrf.mxu0
    %v742 = vadd.f32 %v534, %v741
    %v743 = vpop.f32.mrf.mxu0
    %744 = vdwg.mxu0
    %v745 = vmul.f32 %v619, 0.01
    %v746 = vmul.f32 %v622, 0.01
    %v747 = vmul.f32 %v627, 0.01
    %v748 = vmul.f32 %v630, 0.01
    %v749 = vmul.f32 %v635, 0.01
    %v750 = vmul.f32 %v638, 0.01
    %v751 = vmul.f32 %v643, 0.01
    %v752 = vmul.f32 %v646, 0.01
    %v753 = vmul.f32 %v651, 0.01
    %v754 = vmul.f32 %v654, 0.01
    %v755 = vmul.f32 %v659, 0.01
    %v756 = vmul.f32 %v662, 0.01
    %v757 = vmul.f32 %v667, 0.01
    %v758 = vmul.f32 %v670, 0.01
    %v759 = vmul.f32 %v675, 0.01
    %v760 = vmul.f32 %v678, 0.01
    %v761 = vmul.f32 %v683, 0.01
    %v762 = vmul.f32 %v686, 0.01
    %v763 = vmul.f32 %v691, 0.01
    %v764 = vmul.f32 %v694, 0.01
    %v765 = vmul.f32 %v699, 0.01
    %v766 = vmul.f32 %v702, 0.01
    %v767 = vmul.f32 %v707, 0.01
    %v768 = vmul.f32 %v710, 0.01
    %v769 = vmul.f32 %v715, 0.01
    %v770 = vmul.f32 %v718, 0.01
    %v771 = vmul.f32 %v723, 0.01
    %v772 = vmul.f32 %v726, 0.01
    %v773 = vmul.f32 %v731, 0.01
    %v774 = vmul.f32 %v734, 0.01
    %v775 = vmul.f32 %v739, 0.01
    %v776 = vmul.f32 %v742, 0.01
    %v777 = vmax.f32 %v619, %v745
    %v778 = vmax.f32 %v622, %v746
    %v779 = vmax.f32 %v627, %v747
    %v780 = vmax.f32 %v630, %v748
    %v781 = vmax.f32 %v635, %v749
    %v782 = vmax.f32 %v638, %v750
    %v783 = vmax.f32 %v643, %v751
    %v784 = vmax.f32 %v646, %v752
    %v785 = vmax.f32 %v651, %v753
    %v786 = vmax.f32 %v654, %v754
    %v787 = vmax.f32 %v659, %v755
    %v788 = vmax.f32 %v662, %v756
    %v789 = vmax.f32 %v667, %v757
    %v790 = vmax.f32 %v670, %v758
    %v791 = vmax.f32 %v675, %v759
    %v792 = vmax.f32 %v678, %v760
    %v793 = vmax.f32 %v683, %v761
    %v794 = vmax.f32 %v686, %v762
    %v795 = vmax.f32 %v691, %v763
    %v796 = vmax.f32 %v694, %v764
    %v797 = vmax.f32 %v699, %v765
    %v798 = vmax.f32 %v702, %v766
    %v799 = vmax.f32 %v707, %v767
    %v800 = vmax.f32 %v710, %v768
    %v801 = vmax.f32 %v715, %v769
    %v802 = vmax.f32 %v718, %v770
    %v803 = vmax.f32 %v723, %v771
    %v804 = vmax.f32 %v726, %v772
    %v805 = vmax.f32 %v731, %v773
    %v806 = vmax.f32 %v734, %v774
    %v807 = vmax.f32 %v739, %v775
    %v808 = vmax.f32 %v742, %v776
    %v809 = vpack.c.bf16 %v778, %v777
    %v810 = vpack.c.bf16 %v780, %v779
    %v811 = vpack.c.bf16 %v782, %v781
    %v812 = vpack.c.bf16 %v784, %v783
    %v813 = vpack.c.bf16 %v786, %v785
    %v814 = vpack.c.bf16 %v788, %v787
    %v815 = vpack.c.bf16 %v790, %v789
    %v816 = vpack.c.bf16 %v792, %v791
    %v817 = vpack.c.bf16 %v794, %v793
    %v818 = vpack.c.bf16 %v796, %v795
    %v819 = vpack.c.bf16 %v798, %v797
    %v820 = vpack.c.bf16 %v800, %v799
    %v821 = vpack.c.bf16 %v802, %v801
    %v822 = vpack.c.bf16 %v804, %v803
    %v823 = vpack.c.bf16 %v806, %v805
    %v824 = vpack.c.bf16 %v808, %v807
    %v825 = vld [vmem:[#allocation8] sm:$0xf]
    %v826 = vld [vmem:[#allocation8 + $0x4] sm:$0xf]
    %v827 = vld [vmem:[#allocation8 + $0x8] sm:$0xf]
    %v828 = vld [vmem:[#allocation8 + $0xc] sm:$0xf]
    %v829 = vld [vmem:[#allocation8 + $0x10] sm:$0xf]
    %v830 = vld [vmem:[#allocation8 + $0x14] sm:$0xf]
    %v831 = vld [vmem:[#allocation8 + $0x18] sm:$0xf]
    %v832 = vld [vmem:[#allocation8 + $0x1c] sm:$0xf]
    %v833 = vld [vmem:[#allocation8 + $0x20] sm:$0xf]
    %v834 = vld [vmem:[#allocation8 + $0x24] sm:$0xf]
    %v835 = vld [vmem:[#allocation8 + $0x28] sm:$0xf]
    %v836 = vld [vmem:[#allocation8 + $0x2c] sm:$0xf]
    %v837 = vld [vmem:[#allocation8 + $0x30] sm:$0xf]
    %v838 = vld [vmem:[#allocation8 + $0x34] sm:$0xf]
    %v839 = vld [vmem:[#allocation8 + $0x38] sm:$0xf]
    %v840 = vld [vmem:[#allocation8 + $0x3c] sm:$0xf]
    %v841 = vld [vmem:[%s5] sm:$0x1]
    %v843 = vlaneseq
    %v844 = vshrl.u32 %v843, 7
    %v845 = vsub.s32 0, %v844
    %v846 = vrot.slane %v841, %v845
    %v864 = vunpack.c.l.b16 %v825
    %v865 = vunpack.c.l.b16 %v826
    %v866 = vunpack.c.l.b16 %v827
    %v867 = vunpack.c.l.b16 %v828
    %v868 = vunpack.c.l.b16 %v829
    %v869 = vunpack.c.l.b16 %v830
    %v870 = vunpack.c.l.b16 %v831
    %v871 = vunpack.c.l.b16 %v832
    %v872 = vunpack.c.l.b16 %v833
    %v873 = vunpack.c.l.b16 %v834
    %v874 = vunpack.c.l.b16 %v835
    %v875 = vunpack.c.l.b16 %v836
    %v876 = vunpack.c.l.b16 %v837
    %v877 = vunpack.c.l.b16 %v838
    %v878 = vunpack.c.l.b16 %v839
    %v879 = vunpack.c.l.b16 %v840
    %v880 = vpack.c.b16 %v865, %v864
    %v881 = vpack.c.b16 %v867, %v866
    %v882 = vpack.c.b16 %v869, %v868
    %v883 = vpack.c.b16 %v871, %v870
    %v884 = vpack.c.b16 %v873, %v872
    %v885 = vpack.c.b16 %v875, %v874
    %v886 = vpack.c.b16 %v877, %v876
    %v887 = vpack.c.b16 %v879, %v878
    %896 = vmatprep.subr.bf16.mxu0 0
    %897 = vmatpush1.bf16.msra.mxu0 %v887
    %898 = vmatprep.subr.bf16.mxu0 0
    %899 = vmatpush1.bf16.msra.mxu0 %v886
    %900 = vmatprep.subr.bf16.mxu0 0
    %901 = vmatpush1.bf16.msra.mxu0 %v885
    %902 = vmatprep.subr.bf16.mxu0 0
    %903 = vmatpush1.bf16.msra.mxu0 %v884
    %904 = vmatprep.subr.bf16.mxu0 0
    %905 = vmatpush1.bf16.msra.mxu0 %v883
    %906 = vmatprep.subr.bf16.mxu0 0
    %907 = vmatpush1.bf16.msra.mxu0 %v882
    %908 = vmatprep.subr.bf16.mxu0 0
    %909 = vmatpush1.bf16.msra.mxu0 %v881
    %910 = vmatprep.subr.bf16.mxu0 0
    %911 = vmatpush1.bf16.msra.mxu0 %v880
    %912 = vmatprep.subr.bf16.mxu0 0
    %913 = vmatpush2.bf16.msra.mxu0 0
    %914 = vmatprep.subr.bf16.mxu0 0
    %915 = vmatpush2.bf16.msra.mxu0 0
    %916 = vmatprep.subr.bf16.mxu0 0
    %917 = vmatpush2.bf16.msra.mxu0 0
    %918 = vmatprep.subr.bf16.mxu0 0
    %919 = vmatpush2.bf16.msra.mxu0 0
    %920 = vmatprep.subr.bf16.mxu0 0
    %921 = vmatpush2.bf16.msra.mxu0 0
    %922 = vmatprep.subr.bf16.mxu0 0
    %923 = vmatpush2.bf16.msra.mxu0 0
    %924 = vmatprep.subr.bf16.mxu0 0
    %925 = vmatpush2.bf16.msra.mxu0 0
    %926 = vmatprep.subr.bf16.mxu0 0
    %927 = vmatpush2.bf16.msra.mxu0 0
    %928 = vmatprep.mubr.bf16.mxu0 0
    %929 = vmatmul.mubr.bf16.gmra.mxu0 %v809
    %v930 = vpop.f32.mrf.mxu0
    %v931 = vadd.f32 %v846, %v930
    %v932 = vpop.f32.mrf.mxu0
    %v933 = vpop.f32.mrf.mxu0
    %v934 = vadd.f32 %v846, %v933
    %v935 = vpop.f32.mrf.mxu0
    %936 = vmatprep.mubr.bf16.mxu0 0
    %937 = vmatmul.mubr.bf16.gmra.mxu0 %v810
    %v938 = vpop.f32.mrf.mxu0
    %v939 = vadd.f32 %v846, %v938
    %v940 = vpop.f32.mrf.mxu0
    %v941 = vpop.f32.mrf.mxu0
    %v942 = vadd.f32 %v846, %v941
    %v943 = vpop.f32.mrf.mxu0
    %944 = vmatprep.mubr.bf16.mxu0 0
    %945 = vmatmul.mubr.bf16.gmra.mxu0 %v811
    %v946 = vpop.f32.mrf.mxu0
    %v947 = vadd.f32 %v846, %v946
    %v948 = vpop.f32.mrf.mxu0
    %v949 = vpop.f32.mrf.mxu0
    %v950 = vadd.f32 %v846, %v949
    %v951 = vpop.f32.mrf.mxu0
    %952 = vmatprep.mubr.bf16.mxu0 0
    %953 = vmatmul.mubr.bf16.gmra.mxu0 %v812
    %v954 = vpop.f32.mrf.mxu0
    %v955 = vadd.f32 %v846, %v954
    %v956 = vpop.f32.mrf.mxu0
    %v957 = vpop.f32.mrf.mxu0
    %v958 = vadd.f32 %v846, %v957
    %v959 = vpop.f32.mrf.mxu0
    %960 = vmatprep.mubr.bf16.mxu0 0
    %961 = vmatmul.mubr.bf16.gmra.mxu0 %v813
    %v962 = vpop.f32.mrf.mxu0
    %v963 = vadd.f32 %v846, %v962
    %v964 = vpop.f32.mrf.mxu0
    %v965 = vpop.f32.mrf.mxu0
    %v966 = vadd.f32 %v846, %v965
    %v967 = vpop.f32.mrf.mxu0
    %968 = vmatprep.mubr.bf16.mxu0 0
    %969 = vmatmul.mubr.bf16.gmra.mxu0 %v814
    %v970 = vpop.f32.mrf.mxu0
    %v971 = vadd.f32 %v846, %v970
    %v972 = vpop.f32.mrf.mxu0
    %v973 = vpop.f32.mrf.mxu0
    %v974 = vadd.f32 %v846, %v973
    %v975 = vpop.f32.mrf.mxu0
    %976 = vmatprep.mubr.bf16.mxu0 0
    %977 = vmatmul.mubr.bf16.gmra.mxu0 %v815
    %v978 = vpop.f32.mrf.mxu0
    %v979 = vadd.f32 %v846, %v978
    %v980 = vpop.f32.mrf.mxu0
    %v981 = vpop.f32.mrf.mxu0
    %v982 = vadd.f32 %v846, %v981
    %v983 = vpop.f32.mrf.mxu0
    %984 = vmatprep.mubr.bf16.mxu0 0
    %985 = vmatmul.mubr.bf16.gmra.mxu0 %v816
    %v986 = vpop.f32.mrf.mxu0
    %v987 = vadd.f32 %v846, %v986
    %v988 = vpop.f32.mrf.mxu0
    %v989 = vpop.f32.mrf.mxu0
    %v990 = vadd.f32 %v846, %v989
    %v991 = vpop.f32.mrf.mxu0
    %992 = vmatprep.mubr.bf16.mxu0 0
    %993 = vmatmul.mubr.bf16.gmra.mxu0 %v817
    %v994 = vpop.f32.mrf.mxu0
    %v995 = vadd.f32 %v846, %v994
    %v996 = vpop.f32.mrf.mxu0
    %v997 = vpop.f32.mrf.mxu0
    %v998 = vadd.f32 %v846, %v997
    %v999 = vpop.f32.mrf.mxu0
    %1000 = vmatprep.mubr.bf16.mxu0 0
    %1001 = vmatmul.mubr.bf16.gmra.mxu0 %v818
    %v1002 = vpop.f32.mrf.mxu0
    %v1003 = vadd.f32 %v846, %v1002
    %v1004 = vpop.f32.mrf.mxu0
    %v1005 = vpop.f32.mrf.mxu0
    %v1006 = vadd.f32 %v846, %v1005
    %v1007 = vpop.f32.mrf.mxu0
    %1008 = vmatprep.mubr.bf16.mxu0 0
    %1009 = vmatmul.mubr.bf16.gmra.mxu0 %v819
    %v1010 = vpop.f32.mrf.mxu0
    %v1011 = vadd.f32 %v846, %v1010
    %v1012 = vpop.f32.mrf.mxu0
    %v1013 = vpop.f32.mrf.mxu0
    %v1014 = vadd.f32 %v846, %v1013
    %v1015 = vpop.f32.mrf.mxu0
    %1016 = vmatprep.mubr.bf16.mxu0 0
    %1017 = vmatmul.mubr.bf16.gmra.mxu0 %v820
    %v1018 = vpop.f32.mrf.mxu0
    %v1019 = vadd.f32 %v846, %v1018
    %v1020 = vpop.f32.mrf.mxu0
    %v1021 = vpop.f32.mrf.mxu0
    %v1022 = vadd.f32 %v846, %v1021
    %v1023 = vpop.f32.mrf.mxu0
    %1024 = vmatprep.mubr.bf16.mxu0 0
    %1025 = vmatmul.mubr.bf16.gmra.mxu0 %v821
    %v1026 = vpop.f32.mrf.mxu0
    %v1027 = vadd.f32 %v846, %v1026
    %v1028 = vpop.f32.mrf.mxu0
    %v1029 = vpop.f32.mrf.mxu0
    %v1030 = vadd.f32 %v846, %v1029
    %v1031 = vpop.f32.mrf.mxu0
    %1032 = vmatprep.mubr.bf16.mxu0 0
    %1033 = vmatmul.mubr.bf16.gmra.mxu0 %v822
    %v1034 = vpop.f32.mrf.mxu0
    %v1035 = vadd.f32 %v846, %v1034
    %v1036 = vpop.f32.mrf.mxu0
    %v1037 = vpop.f32.mrf.mxu0
    %v1038 = vadd.f32 %v846, %v1037
    %v1039 = vpop.f32.mrf.mxu0
    %1040 = vmatprep.mubr.bf16.mxu0 0
    %1041 = vmatmul.mubr.bf16.gmra.mxu0 %v823
    %v1042 = vpop.f32.mrf.mxu0
    %v1043 = vadd.f32 %v846, %v1042
    %v1044 = vpop.f32.mrf.mxu0
    %v1045 = vpop.f32.mrf.mxu0
    %v1046 = vadd.f32 %v846, %v1045
    %v1047 = vpop.f32.mrf.mxu0
    %1048 = vmatprep.mubr.bf16.mxu0 0
    %1049 = vmatmul.mubr.bf16.gmra.mxu0 %v824
    %v1050 = vpop.f32.mrf.mxu0
    %v1051 = vadd.f32 %v846, %v1050
    %v1052 = vpop.f32.mrf.mxu0
    %v1053 = vpop.f32.mrf.mxu0
    %v1054 = vadd.f32 %v846, %v1053
    %v1055 = vpop.f32.mrf.mxu0
    %1056 = vdwg.mxu0
    %v1057 = vpack.c.bf16 %v934, %v931
    %v1058 = vpack.c.bf16 %v942, %v939
    %v1059 = vpack.c.bf16 %v950, %v947
    %v1060 = vpack.c.bf16 %v958, %v955
    %v1061 = vpack.c.bf16 %v966, %v963
    %v1062 = vpack.c.bf16 %v974, %v971
    %v1063 = vpack.c.bf16 %v982, %v979
    %v1064 = vpack.c.bf16 %v990, %v987
    %v1065 = vpack.c.bf16 %v998, %v995
    %v1066 = vpack.c.bf16 %v1006, %v1003
    %v1067 = vpack.c.bf16 %v1014, %v1011
    %v1068 = vpack.c.bf16 %v1022, %v1019
    %v1069 = vpack.c.bf16 %v1030, %v1027
    %v1070 = vpack.c.bf16 %v1038, %v1035
    %v1071 = vpack.c.bf16 %v1046, %v1043
    %v1072 = vpack.c.bf16 %v1054, %v1051
    %v1089 = vunpack.c.l.b16 %v1057
    %v1090 = vunpack.c.h.b16 %v1057
    %v1091 = vunpack.c.l.b16 %v1058
    %v1092 = vunpack.c.h.b16 %v1058
    %v1093 = vunpack.c.l.b16 %v1059
    %v1094 = vunpack.c.h.b16 %v1059
    %v1095 = vunpack.c.l.b16 %v1060
    %v1096 = vunpack.c.h.b16 %v1060
    %v1097 = vunpack.c.l.b16 %v1061
    %v1098 = vunpack.c.h.b16 %v1061
    %v1099 = vunpack.c.l.b16 %v1062
    %v1100 = vunpack.c.h.b16 %v1062
    %v1101 = vunpack.c.l.b16 %v1063
    %v1102 = vunpack.c.h.b16 %v1063
    %v1103 = vunpack.c.l.b16 %v1064
    %v1104 = vunpack.c.h.b16 %v1064
    %v1105 = vunpack.c.l.b16 %v1065
    %v1106 = vunpack.c.h.b16 %v1065
    %v1107 = vunpack.c.l.b16 %v1066
    %v1108 = vunpack.c.h.b16 %v1066
    %v1109 = vunpack.c.l.b16 %v1067
    %v1110 = vunpack.c.h.b16 %v1067
    %v1111 = vunpack.c.l.b16 %v1068
    %v1112 = vunpack.c.h.b16 %v1068
    %v1113 = vunpack.c.l.b16 %v1069
    %v1114 = vunpack.c.h.b16 %v1069
    %v1115 = vunpack.c.l.b16 %v1070
    %v1116 = vunpack.c.h.b16 %v1070
    %v1117 = vunpack.c.l.b16 %v1071
    %v1118 = vunpack.c.h.b16 %v1071
    %v1119 = vunpack.c.l.b16 %v1072
    %v1120 = vunpack.c.h.b16 %v1072
    %v1121 = vpack.c.b16 %v1089, %v1089
    %v1122 = vpack.c.b16 %v1090, %v1090
    %v1123 = vpack.c.b16 %v1091, %v1091
    %v1124 = vpack.c.b16 %v1092, %v1092
    %v1125 = vpack.c.b16 %v1093, %v1093
    %v1126 = vpack.c.b16 %v1094, %v1094
    %v1127 = vpack.c.b16 %v1095, %v1095
    %v1128 = vpack.c.b16 %v1096, %v1096
    %v1129 = vpack.c.b16 %v1097, %v1097
    %v1130 = vpack.c.b16 %v1098, %v1098
    %v1131 = vpack.c.b16 %v1099, %v1099
    %v1132 = vpack.c.b16 %v1100, %v1100
    %v1133 = vpack.c.b16 %v1101, %v1101
    %v1134 = vpack.c.b16 %v1102, %v1102
    %v1135 = vpack.c.b16 %v1103, %v1103
    %v1136 = vpack.c.b16 %v1104, %v1104
    %v1137 = vpack.c.b16 %v1105, %v1105
    %v1138 = vpack.c.b16 %v1106, %v1106
    %v1139 = vpack.c.b16 %v1107, %v1107
    %v1140 = vpack.c.b16 %v1108, %v1108
    %v1141 = vpack.c.b16 %v1109, %v1109
    %v1142 = vpack.c.b16 %v1110, %v1110
    %v1143 = vpack.c.b16 %v1111, %v1111
    %v1144 = vpack.c.b16 %v1112, %v1112
    %v1145 = vpack.c.b16 %v1113, %v1113
    %v1146 = vpack.c.b16 %v1114, %v1114
    %v1147 = vpack.c.b16 %v1115, %v1115
    %v1148 = vpack.c.b16 %v1116, %v1116
    %v1149 = vpack.c.b16 %v1117, %v1117
    %v1150 = vpack.c.b16 %v1118, %v1118
    %v1151 = vpack.c.b16 %v1119, %v1119
    %v1152 = vpack.c.b16 %v1120, %v1120
    %1185 = vst [vmem:[#allocation10] sm:$0xf] %v1121
    %1186 = vst [vmem:[#allocation10 + $0x4] sm:$0xf] %v1122
    %1187 = vst [vmem:[#allocation10 + $0x8] sm:$0xf] %v1123
    %1188 = vst [vmem:[#allocation10 + $0xc] sm:$0xf] %v1124
    %1189 = vst [vmem:[#allocation10 + $0x10] sm:$0xf] %v1125
    %1190 = vst [vmem:[#allocation10 + $0x14] sm:$0xf] %v1126
    %1191 = vst [vmem:[#allocation10 + $0x18] sm:$0xf] %v1127
    %1192 = vst [vmem:[#allocation10 + $0x1c] sm:$0xf] %v1128
    %1193 = vst [vmem:[#allocation10 + $0x20] sm:$0xf] %v1129
    %1194 = vst [vmem:[#allocation10 + $0x24] sm:$0xf] %v1130
    %1195 = vst [vmem:[#allocation10 + $0x28] sm:$0xf] %v1131
    %1196 = vst [vmem:[#allocation10 + $0x2c] sm:$0xf] %v1132
    %1197 = vst [vmem:[#allocation10 + $0x30] sm:$0xf] %v1133
    %1198 = vst [vmem:[#allocation10 + $0x34] sm:$0xf] %v1134
    %1199 = vst [vmem:[#allocation10 + $0x38] sm:$0xf] %v1135
    %1200 = vst [vmem:[#allocation10 + $0x3c] sm:$0xf] %v1136
    %1201 = vst [vmem:[#allocation10 + $0x40] sm:$0xf] %v1137
    %1202 = vst [vmem:[#allocation10 + $0x44] sm:$0xf] %v1138
    %1203 = vst [vmem:[#allocation10 + $0x48] sm:$0xf] %v1139
    %1204 = vst [vmem:[#allocation10 + $0x4c] sm:$0xf] %v1140
    %1205 = vst [vmem:[#allocation10 + $0x50] sm:$0xf] %v1141
    %1206 = vst [vmem:[#allocation10 + $0x54] sm:$0xf] %v1142
    %1207 = vst [vmem:[#allocation10 + $0x58] sm:$0xf] %v1143
    %1208 = vst [vmem:[#allocation10 + $0x5c] sm:$0xf] %v1144
    %1209 = vst [vmem:[#allocation10 + $0x60] sm:$0xf] %v1145
    %1210 = vst [vmem:[#allocation10 + $0x64] sm:$0xf] %v1146
    %1211 = vst [vmem:[#allocation10 + $0x68] sm:$0xf] %v1147
    %1212 = vst [vmem:[#allocation10 + $0x6c] sm:$0xf] %v1148
    %1213 = vst [vmem:[#allocation10 + $0x70] sm:$0xf] %v1149
    %1214 = vst [vmem:[#allocation10 + $0x74] sm:$0xf] %v1150
    %1215 = vst [vmem:[#allocation10 + $0x78] sm:$0xf] %v1151
    %1216 = vst [vmem:[#allocation10 + $0x7c] sm:$0xf] %v1152
    // Predicated region
    $region42: #{tpu_custom_call.1} parent=1 // pred_check
      _
    $region43: #{tpu_custom_call.1} parent=1 // pred_check_branch
      %1218 = sbr.rel (0) target = $region45
    $region44: #{tpu_custom_call.1} parent=1 // pred_region
      %s1220 = ssub.s32 2048, 2048
      %1221 = vsyncadd [#allocation4], %s1220
      %s1222 = sshll.u32 [#allocation10], 4
      %s1223 = int_to_ptr.vmem [resolvable:$true] %s1222
      %1228 = dma.vmem_to_hbm [thread:$0]  %s1223, 2048, %s6, [#allocation4], 64, 64, 4
    $region45: #{tpu_custom_call.1} parent=1 // pred_fallthru
      _
    // Predicated region
    $region46: #{tpu_custom_call.1} parent=1 // pred_check
      _
    $region47: #{tpu_custom_call.1} parent=1 // pred_check_branch
      %1230 = sbr.rel (0) target = $region49
    $region48: #{tpu_custom_call.1} parent=1 // pred_region
      %1231 = dma.done [#allocation4], 2048
    $region49: #{tpu_custom_call.1} parent=1 // pred_fallthru
      _
    %1232 = vsyncpa [#allocation3], 1
    %1233 = vsyncpa [#allocation6], 1
    %1234 = vsyncpa [#allocation9], 1
    %1235 = vsyncpa [#allocation4], 1

</llo_original>
